<compile_context>
chip_gen: v6e
topology: v6e:2x2x1
jax: 0.10.0
libtpu: 0.0.40
codegen_flags: <defaults>
</compile_context>

<pallas_src>
import functools

import jax
import jax.numpy as jnp
from jax.experimental import pallas as pl
from jax.experimental.pallas import tpu as pltpu


# ------------------------------------------------------------- helpers -------

def _params(semantics):
    return pltpu.CompilerParams(dimension_semantics=semantics)


def _full(shape):
    """Whole-array (replicated-per-grid-step) block spec."""
    return pl.BlockSpec(shape, lambda j, _nd=len(shape): (0,) * _nd)


def _conv_step(mt, x, wcat, b, c_out):
    """relu( x @ W_in  +  M^T @ (x @ W_ng)  +  b ) with [W_in | W_ng] fused."""
    tcat = jnp.dot(x, wcat, preferred_element_type=jnp.float32)
    return jnp.maximum(
        tcat[:, :c_out]
        + jnp.dot(mt, tcat[:, c_out:], preferred_element_type=jnp.float32)
        + b, 0.0)


# ------------------------------------------- fused single-launch kernel ------

def _mygwnn_fused_kernel(*refs, n, init, g0_rest, c1_first, g1_rest):
    """Entire MyGWNN forward in one kernel:
       compute_init -> GWNN GCN (+relu) -> mean-pool over m
       -> [GNN0 output Linear folded into] second GCN (+relu) -> output Linear.
    """
    it = iter(refs)
    m_ref, mt_ref = next(it), next(it)
    w_in0_ref, w_ng0_ref, b0_ref = next(it), next(it), next(it)
    g0_rest_refs = [(next(it), next(it)) for _ in g0_rest]
    wfold_ref, bfold_ref, b1_ref = next(it), next(it), next(it)
    g1_rest_refs = [(next(it), next(it)) for _ in g1_rest]
    wout1_ref, bout1_ref = next(it), next(it)
    o_ref = next(it)

    mm, mt = m_ref[...], mt_ref[...]

    # compute_init (node-major): Zn[node, mi] = (n * M^init)[node, mi]
    zn = float(n) * mm
    for _ in range(init - 1):                    # init is a small static constant
        zn = jnp.dot(mm, zn, preferred_element_type=jnp.float32)

    # GWNN conv #0 (c_in == 1): the propagation factorizes into ONE matmul:
    #   propagate(lin_neigh(x))[:, mi, :] == (M^T @ Zn)[:, mi:mi+1] * w_ng
    pz = jnp.dot(mt, zn, preferred_element_type=jnp.float32)
    w_in0, w_ng0, b0 = w_in0_ref[...], w_ng0_ref[...], b0_ref[...]
    xs = [jnp.maximum(zn[:, mi:mi + 1] * w_in0
                      + pz[:, mi:mi + 1] * w_ng0 + b0, 0.0)
          for mi in range(n)]                    # m == n for the GWNN stage

    # remaining GWNN convs (general case; none at the test configuration)
    for (wcat_ref, b_ref), c in zip(g0_rest_refs, g0_rest):
        wcat, b = wcat_ref[...], b_ref[...]
        xs = [_conv_step(mt, x, wcat, b, c) for x in xs]

    # mean-pool over the m axis; GNN0's output Linear commutes with the pool
    # and was folded into GNN1's first conv weights (wrapper).
    pooled = xs[0]
    for x in xs[1:]:
        pooled = pooled + x
    x = pooled * (1.0 / float(n))

    # GNN1 conv #0 with [W_out0 | b_out0] folded into its lin_in / lin_neigh
    tcat = (jnp.dot(x, wfold_ref[...], preferred_element_type=jnp.float32)
            + bfold_ref[...])
    x = jnp.maximum(
        tcat[:, :c1_first]
        + jnp.dot(mt, tcat[:, c1_first:], preferred_element_type=jnp.float32)
        + b1_ref[...], 0.0)

    # remaining GNN1 convs (general case; none at the test configuration)
    for (wcat_ref, b_ref), c in zip(g1_rest_refs, g1_rest):
        x = _conv_step(mt, x, wcat_ref[...], b_ref[...], c)

    # GNN1 output Linear (variant='equi')
    o_ref[...] = (jnp.dot(x, wout1_ref[...], preferred_element_type=jnp.float32)
                  + bout1_ref[...])


def mygwnn_forward_fused(M, params, init):
    n = M.shape[0]
    p0, p1 = params["gnn0"], params["gnn1"]
    mt = M.T

    ops = [M, mt]
    # GWNN conv #0 (c_in == 1 is guaranteed by compute_init's trailing dim)
    w_in0, w_ng0, b0 = p0["convs"][0]
    ops += [w_in0, w_ng0, b0[None, :]]
    g0_rest = []
    for (w_in, w_ng, b) in p0["convs"][1:]:
        ops += [jnp.concatenate([w_in, w_ng], axis=1), b[None, :]]
        g0_rest.append(w_in.shape[1])
    # Fold GNN0.output_lin into GNN1 conv #0 (all linear, no nonlinearity in
    # between):  x1 @ [W_in1|W_ng1] == (pooled/n) @ (W_out0 @ [W_in1|W_ng1])
    #                                   + b_out0 @ [W_in1|W_ng1]
    w_in1, w_ng1, b1 = p1["convs"][0]
    wcat1 = jnp.concatenate([w_in1, w_ng1], axis=1)
    ops += [p0["w_out"] @ wcat1, p0["b_out"][None, :] @ wcat1, b1[None, :]]
    g1_rest = []
    for (w_in, w_ng, b) in p1["convs"][1:]:
        ops += [jnp.concatenate([w_in, w_ng], axis=1), b[None, :]]
        g1_rest.append(w_in.shape[1])
    ops += [p1["w_out"], p1["b_out"][None, :]]
    d1 = p1["w_out"].shape[1]

    kern = functools.partial(
        _mygwnn_fused_kernel, n=n, init=init,
        g0_rest=tuple(g0_rest), c1_first=w_in1.shape[1],
        g1_rest=tuple(g1_rest))

    return pl.pallas_call(
        kern,
        grid=(1,),
        in_specs=[_full(op.shape) for op in ops],
        out_specs=_full((n, d1)),
        out_shape=jax.ShapeDtypeStruct((n, d1), jnp.float32),
        compiler_params=_params(("arbitrary",)),
    )(*ops)


# -------------------- tiled fallback (large graphs: multi-launch path) -------

def _init_kernel(mt_ref, o_ref, *, n, init):
    """Z = n * (M^T)^init  (m-major view of the PyTorch compute_init output)."""
    mt = mt_ref[...]
    acc = float(n) * mt
    for _ in range(init - 1):
        acc = jnp.dot(mt, acc, preferred_element_type=jnp.float32)
    o_ref[...] = acc


def _feature_transform(x, wcat, outer_product):
    if outer_product:                               # c_in == 1: VPU outer product
        return x * wcat
    return jnp.dot(x, wcat, preferred_element_type=jnp.float32)


def _conv_body(mt, tin, xn, bias, n, mi):
    lo = mi * n
    prop = jnp.dot(mt, xn[lo:lo + n, :], preferred_element_type=jnp.float32)
    return jnp.maximum(tin[lo:lo + n, :] + prop + bias, 0.0)


def _gcn_conv_kernel(mt_ref, a_ref, wcat_ref, b_ref, o_ref, *,
                     n, bm, c_out, outer_product):
    tcat = _feature_transform(a_ref[...], wcat_ref[...], outer_product)
    tin, xn = tcat[:, :c_out], tcat[:, c_out:]
    mt, b = mt_ref[...], b_ref[...]
    for mi in range(bm):
        o_ref[mi * n:(mi + 1) * n, :] = _conv_body(mt, tin, xn, b, n, mi)


def _gcn_pool_head_kernel(mt_ref, a_ref, wcat_ref, b_ref, wout_ref, bout_ref,
                          o_ref, acc_ref, *,
                          n, bm, c_out, outer_product, inv_n, m_total):
    j = pl.program_id(0)

    @pl.when(j == 0)
    def _init():
        acc_ref[...] = jnp.zeros_like(acc_ref)

    tcat = _feature_transform(a_ref[...], wcat_ref[...], outer_product)
    tin, xn = tcat[:, :c_out], tcat[:, c_out:]
    mt, b = mt_ref[...], b_ref[...]
    pooled = jnp.zeros((n, c_out), jnp.float32)
    for mi in range(bm):
        pooled = pooled + _conv_body(mt, tin, xn, b, n, mi)
    acc_ref[...] += pooled

    @pl.when(j == pl.num_programs(0) - 1)
    def _finalize():
        out = jnp.dot(acc_ref[...] * inv_n, wout_ref[...],
                      preferred_element_type=jnp.float32)
        o_ref[...] = out + (float(m_total) * inv_n) * bout_ref[...]


def _gcn_head_kernel(mt_ref, a_ref, wcat_ref, b_ref, wout_ref, bout_ref, o_ref,
                     *, n, bm, c_out, outer_product):
    tcat = _feature_transform(a_ref[...], wcat_ref[...], outer_product)
    tin, xn = tcat[:, :c_out], tcat[:, c_out:]
    mt, b = mt_ref[...], b_ref[...]
    for mi in range(bm):
        t = _conv_body(mt, tin, xn, b, n, mi)
        o_ref[mi * n:(mi + 1) * n, :] = (
            jnp.dot(t, wout_ref[...], preferred_element_type=jnp.float32)
            + bout_ref[...])


def pallas_compute_init(mt, n, init):
    return pl.pallas_call(
        functools.partial(_init_kernel, n=n, init=init),
        grid=(1,),
        in_specs=[_full((n, n))],
        out_specs=_full((n, n)),
        out_shape=jax.ShapeDtypeStruct((n, n), jnp.float32),
        compiler_params=_params(("arbitrary",)),
    )(mt)


def _prep_features(a_flat, w_in, w_ng):
    c_in = w_in.shape[0]
    wcat = jnp.concatenate([w_in, w_ng], axis=1)
    if c_in == 1:
        return a_flat, wcat, True
    if c_in % 8:
        pad = 8 - c_in % 8
        a_flat = jnp.pad(a_flat, ((0, 0), (0, pad)))
        wcat = jnp.pad(wcat, ((0, pad), (0, 0)))
    return a_flat, wcat, False


def _choose_bm(m, n):
    if m <= 64:
        return m
    for bm in range(64, 0, -1):
        if m % bm == 0 and (bm * n) % 8 == 0:
            return bm
    return m


def gcn_conv_layer(mt, a_flat, m, n, w_in, w_ng, bias):
    c_out = w_in.shape[1]
    a_p, wcat, outer = _prep_features(a_flat, w_in, w_ng)
    bm = _choose_bm(m, n)
    kern = functools.partial(_gcn_conv_kernel, n=n, bm=bm, c_out=c_out,
                             outer_product=outer)
    return pl.pallas_call(
        kern,
        grid=(m // bm,),
        in_specs=[_full((n, n)),
                  pl.BlockSpec((bm * n, a_p.shape[1]), lambda j: (j, 0)),
                  _full(wcat.shape),
                  _full((1, c_out))],
        out_specs=pl.BlockSpec((bm * n, c_out), lambda j: (j, 0)),
        out_shape=jax.ShapeDtypeStruct((m * n, c_out), jnp.float32),
        compiler_params=_params(("parallel",)),
    )(mt, a_p, wcat, bias[None, :])


def gcn_stage_pool_head(mt, a_flat, m, n, w_in, w_ng, bias, w_out, b_out):
    c_out = w_in.shape[1]
    d_out = w_out.shape[1]
    a_p, wcat, outer = _prep_features(a_flat, w_in, w_ng)
    bm = _choose_bm(m, n)
    kern = functools.partial(_gcn_pool_head_kernel, n=n, bm=bm, c_out=c_out,
                             outer_product=outer, inv_n=1.0 / float(n),
                             m_total=m)
    return pl.pallas_call(
        kern,
        grid=(m // bm,),
        in_specs=[_full((n, n)),
                  pl.BlockSpec((bm * n, a_p.shape[1]), lambda j: (j, 0)),
                  _full(wcat.shape),
                  _full((1, c_out)),
                  _full(w_out.shape),
                  _full((1, d_out))],
        out_specs=_full((n, d_out)),
        out_shape=jax.ShapeDtypeStruct((n, d_out), jnp.float32),
        scratch_shapes=[pltpu.VMEM((n, c_out), jnp.float32)],
        compiler_params=_params(("arbitrary",)),
    )(mt, a_p, wcat, bias[None, :], w_out, b_out[None, :])


def gcn_stage_head(mt, a_flat, m, n, w_in, w_ng, bias, w_out, b_out):
    c_out = w_in.shape[1]
    d_out = w_out.shape[1]
    a_p, wcat, outer = _prep_features(a_flat, w_in, w_ng)
    bm = _choose_bm(m, n)
    kern = functools.partial(_gcn_head_kernel, n=n, bm=bm, c_out=c_out,
                             outer_product=outer)
    return pl.pallas_call(
        kern,
        grid=(m // bm,),
        in_specs=[_full((n, n)),
                  pl.BlockSpec((bm * n, a_p.shape[1]), lambda j: (j, 0)),
                  _full(wcat.shape),
                  _full((1, c_out)),
                  _full(w_out.shape),
                  _full((1, d_out))],
        out_specs=pl.BlockSpec((bm * n, d_out), lambda j: (j, 0)),
        out_shape=jax.ShapeDtypeStruct((m * n, d_out), jnp.float32),
        compiler_params=_params(("parallel",)),
    )(mt, a_p, wcat, bias[None, :], w_out, b_out[None, :])


def mygcn_forward(mt, a_flat, m, n, p, pool):
    for (w_in, w_ng, b) in p["convs"][:-1]:
        a_flat = gcn_conv_layer(mt, a_flat, m, n, w_in, w_ng, b)
    w_in, w_ng, b = p["convs"][-1]
    if pool:
        return gcn_stage_pool_head(mt, a_flat, m, n, w_in, w_ng, b,
                                   p["w_out"], p["b_out"])
    return gcn_stage_head(mt, a_flat, m, n, w_in, w_ng, b,
                          p["w_out"], p["b_out"])


def mygwnn_forward_tiled(M, params, init):
    n = M.shape[0]
    mt = M.T
    a = pallas_compute_init(mt, n, init).reshape(n * n, 1)
    x = mygcn_forward(mt, a, n, n, params["gnn0"], pool=True)       # (n, d0)
    return mygcn_forward(mt, x, 1, n, params["gnn1"], pool=False)   # (n, d1)


# ----------------------------------------------------------- model forward ---

def _fused_fits(n, params):
    c_max = max(
        [w.shape[1] for (w, _, _) in params["gnn0"]["convs"]]
        + [w.shape[1] for (w, _, _) in params["gnn1"]["convs"]]
        + [params["gnn0"]["w_out"].shape[1], params["gnn1"]["w_out"].shape[1]])
    vmem_bytes = 4 * n * n * (c_max + 4)      # m-axis activations + (n,n) operands
    return n <= 64 and vmem_bytes <= (16 << 20)


@functools.partial(jax.jit, static_argnames=("init",))
def mygwnn_forward(M, params, *, init=2):
    n = M.shape[0]
    if _fused_fits(n, params):
        return mygwnn_forward_fused(M, params, init)
    # TODO(synk): for very large n the (n, n) propagation operand would also
    # need node-dimension (k-loop) tiling inside the stage kernels.
    return mygwnn_forward_tiled(M, params, init)


# ---------------------------------------------------- params & graph setup ---

def _init_linear(key, fan_in, fan_out):
    bound = 1.0 / jnp.sqrt(float(fan_in))
    return jax.random.uniform(key, (fan_in, fan_out), jnp.float32, -bound, bound)


def make_params(key, dims_before, dims_after):
    def make_gcn(key, dims):
        convs = []
        for i in range(len(dims) - 2):
            key, k1, k2 = jax.random.split(key, 3)
            w_in = _init_linear(k1, dims[i], dims[i + 1])
            w_ng = _init_linear(k2, dims[i], dims[i + 1])
            bias = jnp.zeros((dims[i + 1],), jnp.float32)   # nn.init.constant_(0)
            convs.append((w_in, w_ng, bias))
        key, k1, k2 = jax.random.split(key, 3)
        w_out = _init_linear(k1, dims[-2], dims[-1])
        bound = 1.0 / jnp.sqrt(float(dims[-2]))
        b_out = jax.random.uniform(k2, (dims[-1],), jnp.float32, -bound, bound)
        return {"convs": convs, "w_out": w_out, "b_out": b_out}, key

    g0, key = make_gcn(key, dims_before)
    g1, key = make_gcn(key, dims_after)
    return {"gnn0": g0, "gnn1": g1}


def build_norm_adj(n, edge_index):
    # TODO(synk): sparse edge scatter (get_laplacian / to_dense_adj) stays plain
    # JAX; the Pallas kernels consume the dense normalized adjacency.
    src, dst = edge_index
    w = jnp.ones((src.shape[0],), jnp.float32)
    deg = jnp.zeros((n,), jnp.float32).at[src].add(w)
    dinv = jnp.where(deg > 0, 1.0 / jnp.sqrt(deg), 0.0)
    wn = dinv[src] * w * dinv[dst]
    return jnp.zeros((n, n), jnp.float32).at[src, dst].add(wn)


# --------------------------------------------------------------------- main --

if __name__ == "__main__":
    n = 8
    init = 2
    dims_before = [1, 8, 4]     # GWNN stage: in_channels forced to 1 by compute_init
    dims_after = [4, 8, 4]

    key = jax.random.PRNGKey(0)
    params = make_params(key, dims_before, dims_after)

    # undirected ring graph (both edge directions), no self loops
    idx = jnp.arange(n)
    src = jnp.concatenate([idx, (idx + 1) % n])
    dst = jnp.concatenate([(idx + 1) % n, idx])
    edge_index = jnp.stack([src, dst]).astype(jnp.int32)

    M = build_norm_adj(n, edge_index)

    out = mygwnn_forward(M, params, init=init)
    out = jax.block_until_ready(out)

    # plain-JAX reference for correctness
    def ref_forward(n, M, params, init):
        P = M.T
        o = float(n) * M
        for _ in range(init - 1):
            o = M @ o
        x3 = o[:, :, None]

        def gcn(x3, p):
            for (w_in, w_ng, b) in p["convs"]:
                t = (jnp.einsum("nmc,cd->nmd", x3, w_in)
                     + jnp.einsum("ij,jmd->imd", P,
                                  jnp.einsum("nmc,cd->nmd", x3, w_ng))
                     + b)
                x3 = jnp.maximum(t, 0.0)
            return jnp.einsum("nmc,cd->nmd", x3, p["w_out"]) + p["b_out"]

        x3 = gcn(x3, params["gnn0"])
        x = x3.sum(axis=1) / n
        x3 = gcn(x[:, None, :], params["gnn1"])
        return x3[:, 0, :]

    ref = ref_forward(n, M, params, init)
    assert out.shape == (n, dims_after[-1])
    assert jnp.allclose(out, ref, atol=1e-3, rtol=1e-3), "mismatch vs reference"
    print("KERNEL_OK")
</pallas_src>

<mosaic_0001>
module attributes {stable_mosaic.version = 11 : i64} {
  func.func @_mygwnn_fused_kernel(%arg0: i32, %arg1: memref<8x8xf32, #tpu.memory_space<vmem>>, %arg2: memref<8x8xf32, #tpu.memory_space<vmem>>, %arg3: memref<1x8xf32, #tpu.memory_space<vmem>>, %arg4: memref<1x8xf32, #tpu.memory_space<vmem>>, %arg5: memref<1x8xf32, #tpu.memory_space<vmem>>, %arg6: memref<8x16xf32, #tpu.memory_space<vmem>>, %arg7: memref<1x16xf32, #tpu.memory_space<vmem>>, %arg8: memref<1x8xf32, #tpu.memory_space<vmem>>, %arg9: memref<8x4xf32, #tpu.memory_space<vmem>>, %arg10: memref<1x4xf32, #tpu.memory_space<vmem>>, %arg11: memref<8x4xf32, #tpu.memory_space<vmem>>) attributes {dimension_semantics = [#tpu.dimension_semantics<arbitrary>], iteration_bounds = array<i64: 1>, scalar_prefetch = 0 : i64, scratch_operands = 0 : i64, tpu.core_type = #tpu.core_type<tc>, window_params = [{pipeline_mode = #tpu.pipeline_mode<synchronous>, transform_indices = @transform_0, window_bounds = array<i64: 8, 8>}, {pipeline_mode = #tpu.pipeline_mode<synchronous>, transform_indices = @transform_1, window_bounds = array<i64: 8, 8>}, {pipeline_mode = #tpu.pipeline_mode<synchronous>, transform_indices = @transform_2, window_bounds = array<i64: 1, 8>}, {pipeline_mode = #tpu.pipeline_mode<synchronous>, transform_indices = @transform_3, window_bounds = array<i64: 1, 8>}, {pipeline_mode = #tpu.pipeline_mode<synchronous>, transform_indices = @transform_4, window_bounds = array<i64: 1, 8>}, {pipeline_mode = #tpu.pipeline_mode<synchronous>, transform_indices = @transform_5, window_bounds = array<i64: 8, 16>}, {pipeline_mode = #tpu.pipeline_mode<synchronous>, transform_indices = @transform_6, window_bounds = array<i64: 1, 16>}, {pipeline_mode = #tpu.pipeline_mode<synchronous>, transform_indices = @transform_7, window_bounds = array<i64: 1, 8>}, {pipeline_mode = #tpu.pipeline_mode<synchronous>, transform_indices = @transform_8, window_bounds = array<i64: 8, 4>}, {pipeline_mode = #tpu.pipeline_mode<synchronous>, transform_indices = @transform_9, window_bounds = array<i64: 1, 4>}, {pipeline_mode = #tpu.pipeline_mode<synchronous>, transform_indices = @transform_10, window_bounds = array<i64: 8, 4>}]} {
    %c0 = arith.constant 0 : index
    %c0_0 = arith.constant 0 : index
    %0 = vector.load %arg1[%c0, %c0_0] : memref<8x8xf32, #tpu.memory_space<vmem>>, vector<8x8xf32>
    %c0_1 = arith.constant 0 : index
    %c0_2 = arith.constant 0 : index
    %1 = vector.load %arg2[%c0_1, %c0_2] : memref<8x8xf32, #tpu.memory_space<vmem>>, vector<8x8xf32>
    %cst = arith.constant 8.000000e+00 : f32
    %2 = vector.broadcast %cst : f32 to vector<8x8xf32>
    %3 = arith.mulf %2, %0 : vector<8x8xf32>
    %cst_3 = arith.constant dense<0.000000e+00> : vector<8x8xf32>
    %4 = tpu.matmul %0, %3, %cst_3 {dimension_numbers = #tpu.dot_dimension_numbers<[1], [0], [0], [1], [0, 0, 1, 1], [], []>} : vector<8x8xf32>, vector<8x8xf32>, vector<8x8xf32> -> vector<8x8xf32>
    %cst_4 = arith.constant dense<0.000000e+00> : vector<8x8xf32>
    %5 = tpu.matmul %1, %4, %cst_4 {dimension_numbers = #tpu.dot_dimension_numbers<[1], [0], [0], [1], [0, 0, 1, 1], [], []>} : vector<8x8xf32>, vector<8x8xf32>, vector<8x8xf32> -> vector<8x8xf32>
    %c0_5 = arith.constant 0 : index
    %c0_6 = arith.constant 0 : index
    %6 = vector.load %arg3[%c0_5, %c0_6] : memref<1x8xf32, #tpu.memory_space<vmem>>, vector<1x8xf32>
    %c0_7 = arith.constant 0 : index
    %c0_8 = arith.constant 0 : index
    %7 = vector.load %arg4[%c0_7, %c0_8] : memref<1x8xf32, #tpu.memory_space<vmem>>, vector<1x8xf32>
    %c0_9 = arith.constant 0 : index
    %c0_10 = arith.constant 0 : index
    %8 = vector.load %arg5[%c0_9, %c0_10] : memref<1x8xf32, #tpu.memory_space<vmem>>, vector<1x8xf32>
    %9 = vector.extract_strided_slice %4 {offsets = [0, 0], sizes = [8, 1], strides = [1, 1]} : vector<8x8xf32> to vector<8x1xf32>
    %10 = vector.broadcast %9 : vector<8x1xf32> to vector<8x8xf32>
    %11 = vector.broadcast %6 : vector<1x8xf32> to vector<8x8xf32>
    %12 = arith.mulf %10, %11 : vector<8x8xf32>
    %13 = vector.extract_strided_slice %5 {offsets = [0, 0], sizes = [8, 1], strides = [1, 1]} : vector<8x8xf32> to vector<8x1xf32>
    %14 = vector.broadcast %13 : vector<8x1xf32> to vector<8x8xf32>
    %15 = vector.broadcast %7 : vector<1x8xf32> to vector<8x8xf32>
    %16 = arith.mulf %14, %15 : vector<8x8xf32>
    %17 = arith.addf %12, %16 : vector<8x8xf32>
    %18 = vector.broadcast %8 : vector<1x8xf32> to vector<8x8xf32>
    %19 = arith.addf %17, %18 : vector<8x8xf32>
    %cst_11 = arith.constant 0.000000e+00 : f32
    %20 = vector.broadcast %cst_11 : f32 to vector<8x8xf32>
    %21 = arith.maximumf %19, %20 : vector<8x8xf32>
    %22 = vector.extract_strided_slice %4 {offsets = [0, 1], sizes = [8, 1], strides = [1, 1]} : vector<8x8xf32> to vector<8x1xf32>
    %23 = vector.broadcast %22 : vector<8x1xf32> to vector<8x8xf32>
    %24 = vector.broadcast %6 : vector<1x8xf32> to vector<8x8xf32>
    %25 = arith.mulf %23, %24 : vector<8x8xf32>
    %26 = vector.extract_strided_slice %5 {offsets = [0, 1], sizes = [8, 1], strides = [1, 1]} : vector<8x8xf32> to vector<8x1xf32>
    %27 = vector.broadcast %26 : vector<8x1xf32> to vector<8x8xf32>
    %28 = vector.broadcast %7 : vector<1x8xf32> to vector<8x8xf32>
    %29 = arith.mulf %27, %28 : vector<8x8xf32>
    %30 = arith.addf %25, %29 : vector<8x8xf32>
    %31 = vector.broadcast %8 : vector<1x8xf32> to vector<8x8xf32>
    %32 = arith.addf %30, %31 : vector<8x8xf32>
    %cst_12 = arith.constant 0.000000e+00 : f32
    %33 = vector.broadcast %cst_12 : f32 to vector<8x8xf32>
    %34 = arith.maximumf %32, %33 : vector<8x8xf32>
    %35 = vector.extract_strided_slice %4 {offsets = [0, 2], sizes = [8, 1], strides = [1, 1]} : vector<8x8xf32> to vector<8x1xf32>
    %36 = vector.broadcast %35 : vector<8x1xf32> to vector<8x8xf32>
    %37 = vector.broadcast %6 : vector<1x8xf32> to vector<8x8xf32>
    %38 = arith.mulf %36, %37 : vector<8x8xf32>
    %39 = vector.extract_strided_slice %5 {offsets = [0, 2], sizes = [8, 1], strides = [1, 1]} : vector<8x8xf32> to vector<8x1xf32>
    %40 = vector.broadcast %39 : vector<8x1xf32> to vector<8x8xf32>
    %41 = vector.broadcast %7 : vector<1x8xf32> to vector<8x8xf32>
    %42 = arith.mulf %40, %41 : vector<8x8xf32>
    %43 = arith.addf %38, %42 : vector<8x8xf32>
    %44 = vector.broadcast %8 : vector<1x8xf32> to vector<8x8xf32>
    %45 = arith.addf %43, %44 : vector<8x8xf32>
    %cst_13 = arith.constant 0.000000e+00 : f32
    %46 = vector.broadcast %cst_13 : f32 to vector<8x8xf32>
    %47 = arith.maximumf %45, %46 : vector<8x8xf32>
    %48 = vector.extract_strided_slice %4 {offsets = [0, 3], sizes = [8, 1], strides = [1, 1]} : vector<8x8xf32> to vector<8x1xf32>
    %49 = vector.broadcast %48 : vector<8x1xf32> to vector<8x8xf32>
    %50 = vector.broadcast %6 : vector<1x8xf32> to vector<8x8xf32>
    %51 = arith.mulf %49, %50 : vector<8x8xf32>
    %52 = vector.extract_strided_slice %5 {offsets = [0, 3], sizes = [8, 1], strides = [1, 1]} : vector<8x8xf32> to vector<8x1xf32>
    %53 = vector.broadcast %52 : vector<8x1xf32> to vector<8x8xf32>
    %54 = vector.broadcast %7 : vector<1x8xf32> to vector<8x8xf32>
    %55 = arith.mulf %53, %54 : vector<8x8xf32>
    %56 = arith.addf %51, %55 : vector<8x8xf32>
    %57 = vector.broadcast %8 : vector<1x8xf32> to vector<8x8xf32>
    %58 = arith.addf %56, %57 : vector<8x8xf32>
    %cst_14 = arith.constant 0.000000e+00 : f32
    %59 = vector.broadcast %cst_14 : f32 to vector<8x8xf32>
    %60 = arith.maximumf %58, %59 : vector<8x8xf32>
    %61 = vector.extract_strided_slice %4 {offsets = [0, 4], sizes = [8, 1], strides = [1, 1]} : vector<8x8xf32> to vector<8x1xf32>
    %62 = vector.broadcast %61 : vector<8x1xf32> to vector<8x8xf32>
    %63 = vector.broadcast %6 : vector<1x8xf32> to vector<8x8xf32>
    %64 = arith.mulf %62, %63 : vector<8x8xf32>
    %65 = vector.extract_strided_slice %5 {offsets = [0, 4], sizes = [8, 1], strides = [1, 1]} : vector<8x8xf32> to vector<8x1xf32>
    %66 = vector.broadcast %65 : vector<8x1xf32> to vector<8x8xf32>
    %67 = vector.broadcast %7 : vector<1x8xf32> to vector<8x8xf32>
    %68 = arith.mulf %66, %67 : vector<8x8xf32>
    %69 = arith.addf %64, %68 : vector<8x8xf32>
    %70 = vector.broadcast %8 : vector<1x8xf32> to vector<8x8xf32>
    %71 = arith.addf %69, %70 : vector<8x8xf32>
    %cst_15 = arith.constant 0.000000e+00 : f32
    %72 = vector.broadcast %cst_15 : f32 to vector<8x8xf32>
    %73 = arith.maximumf %71, %72 : vector<8x8xf32>
    %74 = vector.extract_strided_slice %4 {offsets = [0, 5], sizes = [8, 1], strides = [1, 1]} : vector<8x8xf32> to vector<8x1xf32>
    %75 = vector.broadcast %74 : vector<8x1xf32> to vector<8x8xf32>
    %76 = vector.broadcast %6 : vector<1x8xf32> to vector<8x8xf32>
    %77 = arith.mulf %75, %76 : vector<8x8xf32>
    %78 = vector.extract_strided_slice %5 {offsets = [0, 5], sizes = [8, 1], strides = [1, 1]} : vector<8x8xf32> to vector<8x1xf32>
    %79 = vector.broadcast %78 : vector<8x1xf32> to vector<8x8xf32>
    %80 = vector.broadcast %7 : vector<1x8xf32> to vector<8x8xf32>
    %81 = arith.mulf %79, %80 : vector<8x8xf32>
    %82 = arith.addf %77, %81 : vector<8x8xf32>
    %83 = vector.broadcast %8 : vector<1x8xf32> to vector<8x8xf32>
    %84 = arith.addf %82, %83 : vector<8x8xf32>
    %cst_16 = arith.constant 0.000000e+00 : f32
    %85 = vector.broadcast %cst_16 : f32 to vector<8x8xf32>
    %86 = arith.maximumf %84, %85 : vector<8x8xf32>
    %87 = vector.extract_strided_slice %4 {offsets = [0, 6], sizes = [8, 1], strides = [1, 1]} : vector<8x8xf32> to vector<8x1xf32>
    %88 = vector.broadcast %87 : vector<8x1xf32> to vector<8x8xf32>
    %89 = vector.broadcast %6 : vector<1x8xf32> to vector<8x8xf32>
    %90 = arith.mulf %88, %89 : vector<8x8xf32>
    %91 = vector.extract_strided_slice %5 {offsets = [0, 6], sizes = [8, 1], strides = [1, 1]} : vector<8x8xf32> to vector<8x1xf32>
    %92 = vector.broadcast %91 : vector<8x1xf32> to vector<8x8xf32>
    %93 = vector.broadcast %7 : vector<1x8xf32> to vector<8x8xf32>
    %94 = arith.mulf %92, %93 : vector<8x8xf32>
    %95 = arith.addf %90, %94 : vector<8x8xf32>
    %96 = vector.broadcast %8 : vector<1x8xf32> to vector<8x8xf32>
    %97 = arith.addf %95, %96 : vector<8x8xf32>
    %cst_17 = arith.constant 0.000000e+00 : f32
    %98 = vector.broadcast %cst_17 : f32 to vector<8x8xf32>
    %99 = arith.maximumf %97, %98 : vector<8x8xf32>
    %100 = vector.extract_strided_slice %4 {offsets = [0, 7], sizes = [8, 1], strides = [1, 1]} : vector<8x8xf32> to vector<8x1xf32>
    %101 = vector.broadcast %100 : vector<8x1xf32> to vector<8x8xf32>
    %102 = vector.broadcast %6 : vector<1x8xf32> to vector<8x8xf32>
    %103 = arith.mulf %101, %102 : vector<8x8xf32>
    %104 = vector.extract_strided_slice %5 {offsets = [0, 7], sizes = [8, 1], strides = [1, 1]} : vector<8x8xf32> to vector<8x1xf32>
    %105 = vector.broadcast %104 : vector<8x1xf32> to vector<8x8xf32>
    %106 = vector.broadcast %7 : vector<1x8xf32> to vector<8x8xf32>
    %107 = arith.mulf %105, %106 : vector<8x8xf32>
    %108 = arith.addf %103, %107 : vector<8x8xf32>
    %109 = vector.broadcast %8 : vector<1x8xf32> to vector<8x8xf32>
    %110 = arith.addf %108, %109 : vector<8x8xf32>
    %cst_18 = arith.constant 0.000000e+00 : f32
    %111 = vector.broadcast %cst_18 : f32 to vector<8x8xf32>
    %112 = arith.maximumf %110, %111 : vector<8x8xf32>
    %113 = arith.addf %21, %34 : vector<8x8xf32>
    %114 = arith.addf %113, %47 : vector<8x8xf32>
    %115 = arith.addf %114, %60 : vector<8x8xf32>
    %116 = arith.addf %115, %73 : vector<8x8xf32>
    %117 = arith.addf %116, %86 : vector<8x8xf32>
    %118 = arith.addf %117, %99 : vector<8x8xf32>
    %119 = arith.addf %118, %112 : vector<8x8xf32>
    %cst_19 = arith.constant 1.250000e-01 : f32
    %120 = vector.broadcast %cst_19 : f32 to vector<8x8xf32>
    %121 = arith.mulf %119, %120 : vector<8x8xf32>
    %c0_20 = arith.constant 0 : index
    %c0_21 = arith.constant 0 : index
    %122 = vector.load %arg6[%c0_20, %c0_21] : memref<8x16xf32, #tpu.memory_space<vmem>>, vector<8x16xf32>
    %cst_22 = arith.constant dense<0.000000e+00> : vector<8x16xf32>
    %123 = tpu.matmul %121, %122, %cst_22 {dimension_numbers = #tpu.dot_dimension_numbers<[1], [0], [0], [1], [0, 0, 1, 1], [], []>} : vector<8x8xf32>, vector<8x16xf32>, vector<8x16xf32> -> vector<8x16xf32>
    %c0_23 = arith.constant 0 : index
    %c0_24 = arith.constant 0 : index
    %124 = vector.load %arg7[%c0_23, %c0_24] : memref<1x16xf32, #tpu.memory_space<vmem>>, vector<1x16xf32>
    %125 = vector.broadcast %124 : vector<1x16xf32> to vector<8x16xf32>
    %126 = arith.addf %123, %125 : vector<8x16xf32>
    %127 = vector.extract_strided_slice %126 {offsets = [0, 0], sizes = [8, 8], strides = [1, 1]} : vector<8x16xf32> to vector<8x8xf32>
    %128 = vector.extract_strided_slice %126 {offsets = [0, 8], sizes = [8, 8], strides = [1, 1]} : vector<8x16xf32> to vector<8x8xf32>
    %cst_25 = arith.constant dense<0.000000e+00> : vector<8x8xf32>
    %129 = tpu.matmul %1, %128, %cst_25 {dimension_numbers = #tpu.dot_dimension_numbers<[1], [0], [0], [1], [0, 0, 1, 1], [], []>} : vector<8x8xf32>, vector<8x8xf32>, vector<8x8xf32> -> vector<8x8xf32>
    %130 = arith.addf %127, %129 : vector<8x8xf32>
    %c0_26 = arith.constant 0 : index
    %c0_27 = arith.constant 0 : index
    %131 = vector.load %arg8[%c0_26, %c0_27] : memref<1x8xf32, #tpu.memory_space<vmem>>, vector<1x8xf32>
    %132 = vector.broadcast %131 : vector<1x8xf32> to vector<8x8xf32>
    %133 = arith.addf %130, %132 : vector<8x8xf32>
    %cst_28 = arith.constant 0.000000e+00 : f32
    %134 = vector.broadcast %cst_28 : f32 to vector<8x8xf32>
    %135 = arith.maximumf %133, %134 : vector<8x8xf32>
    %c0_29 = arith.constant 0 : index
    %c0_30 = arith.constant 0 : index
    %136 = vector.load %arg9[%c0_29, %c0_30] : memref<8x4xf32, #tpu.memory_space<vmem>>, vector<8x4xf32>
    %cst_31 = arith.constant dense<0.000000e+00> : vector<8x4xf32>
    %137 = tpu.matmul %135, %136, %cst_31 {dimension_numbers = #tpu.dot_dimension_numbers<[1], [0], [0], [1], [0, 0, 1, 1], [], []>} : vector<8x8xf32>, vector<8x4xf32>, vector<8x4xf32> -> vector<8x4xf32>
    %c0_32 = arith.constant 0 : index
    %c0_33 = arith.constant 0 : index
    %138 = vector.load %arg10[%c0_32, %c0_33] : memref<1x4xf32, #tpu.memory_space<vmem>>, vector<1x4xf32>
    %139 = vector.broadcast %138 : vector<1x4xf32> to vector<8x4xf32>
    %140 = arith.addf %137, %139 : vector<8x4xf32>
    %c0_34 = arith.constant 0 : index
    %c0_35 = arith.constant 0 : index
    %141 = vector.load %arg11[%c0_34, %c0_35] : memref<8x4xf32, #tpu.memory_space<vmem>>, vector<8x4xf32>
    tpu.vector_store %arg11[%c0_34, %c0_35], %140 {strides = array<i32>} : memref<8x4xf32, #tpu.memory_space<vmem>>, vector<8x4xf32>,
    return
  }
  func.func @transform_0(%arg0: i32) -> (i32, i32) {
    %c0_i32 = arith.constant 0 : i32
    %c0_i32_0 = arith.constant 0 : i32
    %c0_i32_1 = arith.constant 0 : i32
    return %c0_i32, %c0_i32_0 : i32, i32
  }
  func.func @transform_1(%arg0: i32) -> (i32, i32) {
    %c0_i32 = arith.constant 0 : i32
    %c0_i32_0 = arith.constant 0 : i32
    %c0_i32_1 = arith.constant 0 : i32
    return %c0_i32, %c0_i32_0 : i32, i32
  }
  func.func @transform_2(%arg0: i32) -> (i32, i32) {
    %c0_i32 = arith.constant 0 : i32
    %c0_i32_0 = arith.constant 0 : i32
    %c0_i32_1 = arith.constant 0 : i32
    return %c0_i32, %c0_i32_0 : i32, i32
  }
  func.func @transform_3(%arg0: i32) -> (i32, i32) {
    %c0_i32 = arith.constant 0 : i32
    %c0_i32_0 = arith.constant 0 : i32
    %c0_i32_1 = arith.constant 0 : i32
    return %c0_i32, %c0_i32_0 : i32, i32
  }
  func.func @transform_4(%arg0: i32) -> (i32, i32) {
    %c0_i32 = arith.constant 0 : i32
    %c0_i32_0 = arith.constant 0 : i32
    %c0_i32_1 = arith.constant 0 : i32
    return %c0_i32, %c0_i32_0 : i32, i32
  }
  func.func @transform_5(%arg0: i32) -> (i32, i32) {
    %c0_i32 = arith.constant 0 : i32
    %c0_i32_0 = arith.constant 0 : i32
    %c0_i32_1 = arith.constant 0 : i32
    return %c0_i32, %c0_i32_0 : i32, i32
  }
  func.func @transform_6(%arg0: i32) -> (i32, i32) {
    %c0_i32 = arith.constant 0 : i32
    %c0_i32_0 = arith.constant 0 : i32
    %c0_i32_1 = arith.constant 0 : i32
    return %c0_i32, %c0_i32_0 : i32, i32
  }
  func.func @transform_7(%arg0: i32) -> (i32, i32) {
    %c0_i32 = arith.constant 0 : i32
    %c0_i32_0 = arith.constant 0 : i32
    %c0_i32_1 = arith.constant 0 : i32
    return %c0_i32, %c0_i32_0 : i32, i32
  }
  func.func @transform_8(%arg0: i32) -> (i32, i32) {
    %c0_i32 = arith.constant 0 : i32
    %c0_i32_0 = arith.constant 0 : i32
    %c0_i32_1 = arith.constant 0 : i32
    return %c0_i32, %c0_i32_0 : i32, i32
  }
  func.func @transform_9(%arg0: i32) -> (i32, i32) {
    %c0_i32 = arith.constant 0 : i32
    %c0_i32_0 = arith.constant 0 : i32
    %c0_i32_1 = arith.constant 0 : i32
    return %c0_i32, %c0_i32_0 : i32, i32
  }
  func.func @transform_10(%arg0: i32) -> (i32, i32) {
    %c0_i32 = arith.constant 0 : i32
    %c0_i32_0 = arith.constant 0 : i32
    %c0_i32_1 = arith.constant 0 : i32
    return %c0_i32, %c0_i32_0 : i32, i32
  }
}

</mosaic_0001>

<llo_original>
// kernel: mygwnn_forward.1
$region0: #{mygwnn_forward.1}
  #allocation0 [shape = 'u32[]', space=smem, size = 0x4, offset = 0x4, fixed_abs, tag = 'smem constant byte address 0x4 - core index']
  #allocation1 [shape = 'u32[144,128]{1,0:T(1,128)}', space=vmem, size = 0x12000, scoped, tag = 'internal scratch']
  %s0 = inlined_call_operand.vmem [shape: f32[8,8], index: 0, kind: input, shape index: {}]
  %s1 = inlined_call_operand.vmem [shape: f32[8,8], index: 1, kind: input, shape index: {}]
  %s2 = inlined_call_operand.vmem [shape: f32[1,8], index: 2, kind: input, shape index: {}]
  %s3 = inlined_call_operand.vmem [shape: f32[1,8], index: 3, kind: input, shape index: {}]
  %s4 = inlined_call_operand.vmem [shape: f32[1,8], index: 4, kind: input, shape index: {}]
  %s5 = inlined_call_operand.vmem [shape: f32[8,16], index: 5, kind: input, shape index: {}]
  %s6 = inlined_call_operand.vmem [shape: f32[1,16], index: 6, kind: input, shape index: {}]
  %s7 = inlined_call_operand.vmem [shape: f32[1,8], index: 7, kind: input, shape index: {}]
  %s8 = inlined_call_operand.vmem [shape: f32[8,4], index: 8, kind: input, shape index: {}]
  %s9 = inlined_call_operand.vmem [shape: f32[1,4], index: 9, kind: input, shape index: {}]
  %s10 = inlined_call_operand.vmem [shape: f32[8,4], index: 10, kind: output, shape index: {}]
  %s11 = sld [smem:[#allocation0]]
  $region50: #{mygwnn_forward.1} parent=0
    _
  %s13 = ssub.s32 1, %s11
  %s14 = scalar_select 0, %s13, %s11
  // Predicated region
  $region2: #{mygwnn_forward.1} parent=0 // pred_check
    _
  $region3: #{mygwnn_forward.1} parent=0 // pred_check_branch
    %16 = sbr.rel (0) target = $region5
  $region4: #{mygwnn_forward.1} parent=0 // pred_region
    _
  $region5: #{mygwnn_forward.1} parent=0 // pred_fallthru
    _
  // Predicated region
  $region6: #{mygwnn_forward.1} parent=0 // pred_check
    _
  $region7: #{mygwnn_forward.1} parent=0 // pred_check_branch
    %18 = sbr.rel (0) target = $region9
  $region8: #{mygwnn_forward.1} parent=0 // pred_region
    _
  $region9: #{mygwnn_forward.1} parent=0 // pred_fallthru
    _
  // Predicated region
  $region10: #{mygwnn_forward.1} parent=0 // pred_check
    _
  $region11: #{mygwnn_forward.1} parent=0 // pred_check_branch
    %20 = sbr.rel (0) target = $region13
  $region12: #{mygwnn_forward.1} parent=0 // pred_region
    _
  $region13: #{mygwnn_forward.1} parent=0 // pred_fallthru
    _
  // Predicated region
  $region14: #{mygwnn_forward.1} parent=0 // pred_check
    _
  $region15: #{mygwnn_forward.1} parent=0 // pred_check_branch
    %22 = sbr.rel (0) target = $region17
  $region16: #{mygwnn_forward.1} parent=0 // pred_region
    _
  $region17: #{mygwnn_forward.1} parent=0 // pred_fallthru
    _
  // Predicated region
  $region18: #{mygwnn_forward.1} parent=0 // pred_check
    _
  $region19: #{mygwnn_forward.1} parent=0 // pred_check_branch
    %24 = sbr.rel (0) target = $region21
  $region20: #{mygwnn_forward.1} parent=0 // pred_region
    _
  $region21: #{mygwnn_forward.1} parent=0 // pred_fallthru
    _
  // Predicated region
  $region22: #{mygwnn_forward.1} parent=0 // pred_check
    _
  $region23: #{mygwnn_forward.1} parent=0 // pred_check_branch
    %26 = sbr.rel (0) target = $region25
  $region24: #{mygwnn_forward.1} parent=0 // pred_region
    _
  $region25: #{mygwnn_forward.1} parent=0 // pred_fallthru
    _
  // Predicated region
  $region26: #{mygwnn_forward.1} parent=0 // pred_check
    _
  $region27: #{mygwnn_forward.1} parent=0 // pred_check_branch
    %28 = sbr.rel (0) target = $region29
  $region28: #{mygwnn_forward.1} parent=0 // pred_region
    _
  $region29: #{mygwnn_forward.1} parent=0 // pred_fallthru
    _
  // Predicated region
  $region30: #{mygwnn_forward.1} parent=0 // pred_check
    _
  $region31: #{mygwnn_forward.1} parent=0 // pred_check_branch
    %30 = sbr.rel (0) target = $region33
  $region32: #{mygwnn_forward.1} parent=0 // pred_region
    _
  $region33: #{mygwnn_forward.1} parent=0 // pred_fallthru
    _
  // Predicated region
  $region34: #{mygwnn_forward.1} parent=0 // pred_check
    _
  $region35: #{mygwnn_forward.1} parent=0 // pred_check_branch
    %32 = sbr.rel (0) target = $region37
  $region36: #{mygwnn_forward.1} parent=0 // pred_region
    _
  $region37: #{mygwnn_forward.1} parent=0 // pred_fallthru
    _
  // Predicated region
  $region38: #{mygwnn_forward.1} parent=0 // pred_check
    _
  $region39: #{mygwnn_forward.1} parent=0 // pred_check_branch
    %34 = sbr.rel (0) target = $region41
  $region40: #{mygwnn_forward.1} parent=0 // pred_region
    _
  $region41: #{mygwnn_forward.1} parent=0 // pred_fallthru
    _
  %v35 = vld [vmem:[%s0] sm:$0xff]
  %v36 = vld [vmem:[%s1] sm:$0xff]
  %v37 = vmul.f32 %v35, 8.0
  %vm38 = vcmask 64512
  %v40 = vsel %vm38, %v35, 0
  %42 = vmatprep.subr.mxu0 0.0
  %43 = vmatpush1.msra.mxu0 0.0
  %44 = vmatprep.subr.mxu0 0.0
  %45 = vmatpush1.msra.mxu0 0.0
  %46 = vmatprep.subr.mxu0 0.0
  %47 = vmatpush1.msra.mxu0 0.0
  %48 = vmatprep.subr.mxu0 0.0
  %49 = vmatpush1.msra.mxu0 0.0
  %50 = vmatprep.subr.mxu0 0.0
  %51 = vmatpush1.msra.mxu0 0.0
  %52 = vmatprep.subr.mxu0 0.0
  %53 = vmatpush1.msra.mxu0 0.0
  %54 = vmatprep.subr.mxu0 0.0
  %55 = vmatpush1.msra.mxu0 0.0
  %56 = vmatprep.subr.mxu0 0.0
  %57 = vmatpush1.msra.mxu0 0.0
  %58 = vmatprep.subr.mxu0 0.0
  %59 = vmatpush1.msra.mxu0 0.0
  %60 = vmatprep.subr.mxu0 0.0
  %61 = vmatpush1.msra.mxu0 0.0
  %62 = vmatprep.subr.mxu0 0.0
  %63 = vmatpush1.msra.mxu0 0.0
  %64 = vmatprep.subr.mxu0 0.0
  %65 = vmatpush1.msra.mxu0 0.0
  %66 = vmatprep.subr.mxu0 0.0
  %67 = vmatpush1.msra.mxu0 0.0
  %68 = vmatprep.subr.mxu0 0.0
  %69 = vmatpush1.msra.mxu0 0.0
  %70 = vmatprep.subr.mxu0 0.0
  %71 = vmatpush1.msra.mxu0 0.0
  %72 = vmatprep.subr.mxu0 0.0
  %73 = vmatpush1.msra.mxu0 %v37
  %74 = vmatprep.subr.mxu0 0.0
  %75 = vmatpush2.msra.mxu0 0.0
  %76 = vmatprep.subr.mxu0 0.0
  %77 = vmatpush2.msra.mxu0 0.0
  %78 = vmatprep.subr.mxu0 0.0
  %79 = vmatpush2.msra.mxu0 0.0
  %80 = vmatprep.subr.mxu0 0.0
  %81 = vmatpush2.msra.mxu0 0.0
  %82 = vmatprep.subr.mxu0 0.0
  %83 = vmatpush2.msra.mxu0 0.0
  %84 = vmatprep.subr.mxu0 0.0
  %85 = vmatpush2.msra.mxu0 0.0
  %86 = vmatprep.subr.mxu0 0.0
  %87 = vmatpush2.msra.mxu0 0.0
  %88 = vmatprep.subr.mxu0 0.0
  %89 = vmatpush2.msra.mxu0 0.0
  %90 = vmatprep.subr.mxu0 0.0
  %91 = vmatpush2.msra.mxu0 0.0
  %92 = vmatprep.subr.mxu0 0.0
  %93 = vmatpush2.msra.mxu0 0.0
  %94 = vmatprep.subr.mxu0 0.0
  %95 = vmatpush2.msra.mxu0 0.0
  %96 = vmatprep.subr.mxu0 0.0
  %97 = vmatpush2.msra.mxu0 0.0
  %98 = vmatprep.subr.mxu0 0.0
  %99 = vmatpush2.msra.mxu0 0.0
  %100 = vmatprep.subr.mxu0 0.0
  %101 = vmatpush2.msra.mxu0 0.0
  %102 = vmatprep.subr.mxu0 0.0
  %103 = vmatpush2.msra.mxu0 0.0
  %104 = vmatprep.subr.mxu0 0.0
  %105 = vmatpush2.msra.mxu0 0.0
  %106 = vmatprep.mubr.f32.mxu0 0.0
  %107 = vmatmul.mubr.f32.gmra.mxu0 %v40
  %v108 = vpop.f32.mrf.mxu0
  %v109 = vadd.f32 0.0, %v108
  %v110 = vpop.f32.mrf.mxu0
  %111 = vdwg.mxu0
  %v113 = vsel %vm38, %v36, 0
  %115 = vmatprep.subr.mxu0 0.0
  %116 = vmatpush1.msra.mxu0 0.0
  %117 = vmatprep.subr.mxu0 0.0
  %118 = vmatpush1.msra.mxu0 0.0
  %119 = vmatprep.subr.mxu0 0.0
  %120 = vmatpush1.msra.mxu0 0.0
  %121 = vmatprep.subr.mxu0 0.0
  %122 = vmatpush1.msra.mxu0 0.0
  %123 = vmatprep.subr.mxu0 0.0
  %124 = vmatpush1.msra.mxu0 0.0
  %125 = vmatprep.subr.mxu0 0.0
  %126 = vmatpush1.msra.mxu0 0.0
  %127 = vmatprep.subr.mxu0 0.0
  %128 = vmatpush1.msra.mxu0 0.0
  %129 = vmatprep.subr.mxu0 0.0
  %130 = vmatpush1.msra.mxu0 0.0
  %131 = vmatprep.subr.mxu0 0.0
  %132 = vmatpush1.msra.mxu0 0.0
  %133 = vmatprep.subr.mxu0 0.0
  %134 = vmatpush1.msra.mxu0 0.0
  %135 = vmatprep.subr.mxu0 0.0
  %136 = vmatpush1.msra.mxu0 0.0
  %137 = vmatprep.subr.mxu0 0.0
  %138 = vmatpush1.msra.mxu0 0.0
  %139 = vmatprep.subr.mxu0 0.0
  %140 = vmatpush1.msra.mxu0 0.0
  %141 = vmatprep.subr.mxu0 0.0
  %142 = vmatpush1.msra.mxu0 0.0
  %143 = vmatprep.subr.mxu0 0.0
  %144 = vmatpush1.msra.mxu0 0.0
  %145 = vmatprep.subr.mxu0 0.0
  %146 = vmatpush1.msra.mxu0 %v109
  %147 = vmatprep.subr.mxu0 0.0
  %148 = vmatpush2.msra.mxu0 0.0
  %149 = vmatprep.subr.mxu0 0.0
  %150 = vmatpush2.msra.mxu0 0.0
  %151 = vmatprep.subr.mxu0 0.0
  %152 = vmatpush2.msra.mxu0 0.0
  %153 = vmatprep.subr.mxu0 0.0
  %154 = vmatpush2.msra.mxu0 0.0
  %155 = vmatprep.subr.mxu0 0.0
  %156 = vmatpush2.msra.mxu0 0.0
  %157 = vmatprep.subr.mxu0 0.0
  %158 = vmatpush2.msra.mxu0 0.0
  %159 = vmatprep.subr.mxu0 0.0
  %160 = vmatpush2.msra.mxu0 0.0
  %161 = vmatprep.subr.mxu0 0.0
  %162 = vmatpush2.msra.mxu0 0.0
  %163 = vmatprep.subr.mxu0 0.0
  %164 = vmatpush2.msra.mxu0 0.0
  %165 = vmatprep.subr.mxu0 0.0
  %166 = vmatpush2.msra.mxu0 0.0
  %167 = vmatprep.subr.mxu0 0.0
  %168 = vmatpush2.msra.mxu0 0.0
  %169 = vmatprep.subr.mxu0 0.0
  %170 = vmatpush2.msra.mxu0 0.0
  %171 = vmatprep.subr.mxu0 0.0
  %172 = vmatpush2.msra.mxu0 0.0
  %173 = vmatprep.subr.mxu0 0.0
  %174 = vmatpush2.msra.mxu0 0.0
  %175 = vmatprep.subr.mxu0 0.0
  %176 = vmatpush2.msra.mxu0 0.0
  %177 = vmatprep.subr.mxu0 0.0
  %178 = vmatpush2.msra.mxu0 0.0
  %179 = vmatprep.mubr.f32.mxu0 0.0
  %180 = vmatmul.mubr.f32.gmra.mxu0 %v113
  %v181 = vpop.f32.mrf.mxu0
  %v182 = vadd.f32 0.0, %v181
  %v183 = vpop.f32.mrf.mxu0
  %184 = vdwg.mxu0
  %v185 = vld [vmem:[%s2] sm:$0x1]
  %v186 = vld [vmem:[%s3] sm:$0x1]
  %v187 = vld [vmem:[%s4] sm:$0x1]
  %189 = vset.pattern.permute.xlu0 0
  %190 = vperm.xlu0 %189, %v109
  %v191 = vpop.permute.xlu0 %190
  %v194 = vlaneseq
  %v195 = vshrl.u32 %v194, 7
  %v196 = vsub.s32 0, %v195
  %v197 = vrot.slane %v185, %v196
  %v199 = vmul.f32 %v191, %v197
  %201 = vset.pattern.permute.xlu0 0
  %202 = vperm.xlu0 %201, %v182
  %v203 = vpop.permute.xlu0 %202
  %v206 = vlaneseq
  %v207 = vshrl.u32 %v206, 7
  %v208 = vsub.s32 0, %v207
  %v209 = vrot.slane %v186, %v208
  %v211 = vmul.f32 %v203, %v209
  %v212 = vadd.f32 %v199, %v211
  %v214 = vlaneseq
  %v215 = vshrl.u32 %v214, 7
  %v216 = vsub.s32 0, %v215
  %v217 = vrot.slane %v187, %v216
  %v219 = vadd.f32 %v212, %v217
  %v220 = vmax.f32 %v219, 0.0
  %221 = vset.pattern.permute.xlu0 1
  %222 = vperm.xlu0 %221, %v109
  %v223 = vpop.permute.xlu0 %222
  %v225 = vmul.f32 %v223, %v197
  %226 = vset.pattern.permute.xlu0 1
  %227 = vperm.xlu0 %226, %v182
  %v228 = vpop.permute.xlu0 %227
  %v230 = vmul.f32 %v228, %v209
  %v231 = vadd.f32 %v225, %v230
  %v232 = vadd.f32 %v231, %v217
  %v233 = vmax.f32 %v232, 0.0
  %234 = vset.pattern.permute.xlu0 2
  %235 = vperm.xlu0 %234, %v109
  %v236 = vpop.permute.xlu0 %235
  %v238 = vmul.f32 %v236, %v197
  %239 = vset.pattern.permute.xlu0 2
  %240 = vperm.xlu0 %239, %v182
  %v241 = vpop.permute.xlu0 %240
  %v243 = vmul.f32 %v241, %v209
  %v244 = vadd.f32 %v238, %v243
  %v245 = vadd.f32 %v244, %v217
  %v246 = vmax.f32 %v245, 0.0
  %247 = vset.pattern.permute.xlu0 3
  %248 = vperm.xlu0 %247, %v109
  %v249 = vpop.permute.xlu0 %248
  %v251 = vmul.f32 %v249, %v197
  %252 = vset.pattern.permute.xlu0 3
  %253 = vperm.xlu0 %252, %v182
  %v254 = vpop.permute.xlu0 %253
  %v256 = vmul.f32 %v254, %v209
  %v257 = vadd.f32 %v251, %v256
  %v258 = vadd.f32 %v257, %v217
  %v259 = vmax.f32 %v258, 0.0
  %260 = vset.pattern.permute.xlu0 4
  %261 = vperm.xlu0 %260, %v109
  %v262 = vpop.permute.xlu0 %261
  %v264 = vmul.f32 %v262, %v197
  %265 = vset.pattern.permute.xlu0 4
  %266 = vperm.xlu0 %265, %v182
  %v267 = vpop.permute.xlu0 %266
  %v269 = vmul.f32 %v267, %v209
  %v270 = vadd.f32 %v264, %v269
  %v271 = vadd.f32 %v270, %v217
  %v272 = vmax.f32 %v271, 0.0
  %273 = vset.pattern.permute.xlu0 5
  %274 = vperm.xlu0 %273, %v109
  %v275 = vpop.permute.xlu0 %274
  %v277 = vmul.f32 %v275, %v197
  %278 = vset.pattern.permute.xlu0 5
  %279 = vperm.xlu0 %278, %v182
  %v280 = vpop.permute.xlu0 %279
  %v282 = vmul.f32 %v280, %v209
  %v283 = vadd.f32 %v277, %v282
  %v284 = vadd.f32 %v283, %v217
  %v285 = vmax.f32 %v284, 0.0
  %286 = vset.pattern.permute.xlu0 6
  %287 = vperm.xlu0 %286, %v109
  %v288 = vpop.permute.xlu0 %287
  %v290 = vmul.f32 %v288, %v197
  %291 = vset.pattern.permute.xlu0 6
  %292 = vperm.xlu0 %291, %v182
  %v293 = vpop.permute.xlu0 %292
  %v295 = vmul.f32 %v293, %v209
  %v296 = vadd.f32 %v290, %v295
  %v297 = vadd.f32 %v296, %v217
  %v298 = vmax.f32 %v297, 0.0
  %299 = vset.pattern.permute.xlu0 7
  %300 = vperm.xlu0 %299, %v109
  %v301 = vpop.permute.xlu0 %300
  %v303 = vmul.f32 %v301, %v197
  %304 = vset.pattern.permute.xlu0 7
  %305 = vperm.xlu0 %304, %v182
  %v306 = vpop.permute.xlu0 %305
  %v308 = vmul.f32 %v306, %v209
  %v309 = vadd.f32 %v303, %v308
  %v310 = vadd.f32 %v309, %v217
  %v311 = vmax.f32 %v310, 0.0
  %v312 = vadd.f32 %v220, %v233
  %v313 = vadd.f32 %v312, %v246
  %v314 = vadd.f32 %v313, %v259
  %v315 = vadd.f32 %v314, %v272
  %v316 = vadd.f32 %v315, %v285
  %v317 = vadd.f32 %v316, %v298
  %v318 = vadd.f32 %v317, %v311
  %v319 = vmul.f32 %v318, 0.125
  %v320 = vld [vmem:[%s5] sm:$0xff]
  %v321 = vld [vmem:[%s6] sm:$0x1]
  %v323 = vlaneseq
  %v324 = vshrl.u32 %v323, 7
  %v325 = vsub.s32 0, %v324
  %v326 = vrot.slane %v321, %v325
  %v329 = vsel %vm38, %v319, 0
  %331 = vmatprep.subr.mxu0 0.0
  %332 = vmatpush1.msra.mxu0 0.0
  %333 = vmatprep.subr.mxu0 0.0
  %334 = vmatpush1.msra.mxu0 0.0
  %335 = vmatprep.subr.mxu0 0.0
  %336 = vmatpush1.msra.mxu0 0.0
  %337 = vmatprep.subr.mxu0 0.0
  %338 = vmatpush1.msra.mxu0 0.0
  %339 = vmatprep.subr.mxu0 0.0
  %340 = vmatpush1.msra.mxu0 0.0
  %341 = vmatprep.subr.mxu0 0.0
  %342 = vmatpush1.msra.mxu0 0.0
  %343 = vmatprep.subr.mxu0 0.0
  %344 = vmatpush1.msra.mxu0 0.0
  %345 = vmatprep.subr.mxu0 0.0
  %346 = vmatpush1.msra.mxu0 0.0
  %347 = vmatprep.subr.mxu0 0.0
  %348 = vmatpush1.msra.mxu0 0.0
  %349 = vmatprep.subr.mxu0 0.0
  %350 = vmatpush1.msra.mxu0 0.0
  %351 = vmatprep.subr.mxu0 0.0
  %352 = vmatpush1.msra.mxu0 0.0
  %353 = vmatprep.subr.mxu0 0.0
  %354 = vmatpush1.msra.mxu0 0.0
  %355 = vmatprep.subr.mxu0 0.0
  %356 = vmatpush1.msra.mxu0 0.0
  %357 = vmatprep.subr.mxu0 0.0
  %358 = vmatpush1.msra.mxu0 0.0
  %359 = vmatprep.subr.mxu0 0.0
  %360 = vmatpush1.msra.mxu0 0.0
  %361 = vmatprep.subr.mxu0 0.0
  %362 = vmatpush1.msra.mxu0 %v320
  %363 = vmatprep.subr.mxu0 0.0
  %364 = vmatpush2.msra.mxu0 0.0
  %365 = vmatprep.subr.mxu0 0.0
  %366 = vmatpush2.msra.mxu0 0.0
  %367 = vmatprep.subr.mxu0 0.0
  %368 = vmatpush2.msra.mxu0 0.0
  %369 = vmatprep.subr.mxu0 0.0
  %370 = vmatpush2.msra.mxu0 0.0
  %371 = vmatprep.subr.mxu0 0.0
  %372 = vmatpush2.msra.mxu0 0.0
  %373 = vmatprep.subr.mxu0 0.0
  %374 = vmatpush2.msra.mxu0 0.0
  %375 = vmatprep.subr.mxu0 0.0
  %376 = vmatpush2.msra.mxu0 0.0
  %377 = vmatprep.subr.mxu0 0.0
  %378 = vmatpush2.msra.mxu0 0.0
  %379 = vmatprep.subr.mxu0 0.0
  %380 = vmatpush2.msra.mxu0 0.0
  %381 = vmatprep.subr.mxu0 0.0
  %382 = vmatpush2.msra.mxu0 0.0
  %383 = vmatprep.subr.mxu0 0.0
  %384 = vmatpush2.msra.mxu0 0.0
  %385 = vmatprep.subr.mxu0 0.0
  %386 = vmatpush2.msra.mxu0 0.0
  %387 = vmatprep.subr.mxu0 0.0
  %388 = vmatpush2.msra.mxu0 0.0
  %389 = vmatprep.subr.mxu0 0.0
  %390 = vmatpush2.msra.mxu0 0.0
  %391 = vmatprep.subr.mxu0 0.0
  %392 = vmatpush2.msra.mxu0 0.0
  %393 = vmatprep.subr.mxu0 0.0
  %394 = vmatpush2.msra.mxu0 0.0
  %395 = vmatprep.mubr.f32.mxu0 0.0
  %396 = vmatmul.mubr.f32.gmra.mxu0 %v329
  %v397 = vpop.f32.mrf.mxu0
  %v398 = vadd.f32 %v326, %v397
  %v399 = vpop.f32.mrf.mxu0
  %400 = vdwg.mxu0
  %402 = vrot.lane.b32.xlu0 %v398, 120
  %v403 = vpop.permute.xlu0 %402
  %405 = vmatprep.subr.mxu0 0.0
  %406 = vmatpush1.msra.mxu0 0.0
  %407 = vmatprep.subr.mxu0 0.0
  %408 = vmatpush1.msra.mxu0 0.0
  %409 = vmatprep.subr.mxu0 0.0
  %410 = vmatpush1.msra.mxu0 0.0
  %411 = vmatprep.subr.mxu0 0.0
  %412 = vmatpush1.msra.mxu0 0.0
  %413 = vmatprep.subr.mxu0 0.0
  %414 = vmatpush1.msra.mxu0 0.0
  %415 = vmatprep.subr.mxu0 0.0
  %416 = vmatpush1.msra.mxu0 0.0
  %417 = vmatprep.subr.mxu0 0.0
  %418 = vmatpush1.msra.mxu0 0.0
  %419 = vmatprep.subr.mxu0 0.0
  %420 = vmatpush1.msra.mxu0 0.0
  %421 = vmatprep.subr.mxu0 0.0
  %422 = vmatpush1.msra.mxu0 0.0
  %423 = vmatprep.subr.mxu0 0.0
  %424 = vmatpush1.msra.mxu0 0.0
  %425 = vmatprep.subr.mxu0 0.0
  %426 = vmatpush1.msra.mxu0 0.0
  %427 = vmatprep.subr.mxu0 0.0
  %428 = vmatpush1.msra.mxu0 0.0
  %429 = vmatprep.subr.mxu0 0.0
  %430 = vmatpush1.msra.mxu0 0.0
  %431 = vmatprep.subr.mxu0 0.0
  %432 = vmatpush1.msra.mxu0 0.0
  %433 = vmatprep.subr.mxu0 0.0
  %434 = vmatpush1.msra.mxu0 0.0
  %435 = vmatprep.subr.mxu0 0.0
  %436 = vmatpush1.msra.mxu0 %v403
  %437 = vmatprep.subr.mxu0 0.0
  %438 = vmatpush2.msra.mxu0 0.0
  %439 = vmatprep.subr.mxu0 0.0
  %440 = vmatpush2.msra.mxu0 0.0
  %441 = vmatprep.subr.mxu0 0.0
  %442 = vmatpush2.msra.mxu0 0.0
  %443 = vmatprep.subr.mxu0 0.0
  %444 = vmatpush2.msra.mxu0 0.0
  %445 = vmatprep.subr.mxu0 0.0
  %446 = vmatpush2.msra.mxu0 0.0
  %447 = vmatprep.subr.mxu0 0.0
  %448 = vmatpush2.msra.mxu0 0.0
  %449 = vmatprep.subr.mxu0 0.0
  %450 = vmatpush2.msra.mxu0 0.0
  %451 = vmatprep.subr.mxu0 0.0
  %452 = vmatpush2.msra.mxu0 0.0
  %453 = vmatprep.subr.mxu0 0.0
  %454 = vmatpush2.msra.mxu0 0.0
  %455 = vmatprep.subr.mxu0 0.0
  %456 = vmatpush2.msra.mxu0 0.0
  %457 = vmatprep.subr.mxu0 0.0
  %458 = vmatpush2.msra.mxu0 0.0
  %459 = vmatprep.subr.mxu0 0.0
  %460 = vmatpush2.msra.mxu0 0.0
  %461 = vmatprep.subr.mxu0 0.0
  %462 = vmatpush2.msra.mxu0 0.0
  %463 = vmatprep.subr.mxu0 0.0
  %464 = vmatpush2.msra.mxu0 0.0
  %465 = vmatprep.subr.mxu0 0.0
  %466 = vmatpush2.msra.mxu0 0.0
  %467 = vmatprep.subr.mxu0 0.0
  %468 = vmatpush2.msra.mxu0 0.0
  %469 = vmatprep.mubr.f32.mxu0 0.0
  %470 = vmatmul.mubr.f32.gmra.mxu0 %v113
  %v471 = vpop.f32.mrf.mxu0
  %v472 = vadd.f32 0.0, %v471
  %v473 = vpop.f32.mrf.mxu0
  %474 = vdwg.mxu0
  %v475 = vadd.f32 %v398, %v472
  %v476 = vld [vmem:[%s7] sm:$0x1]
  %v478 = vlaneseq
  %v479 = vshrl.u32 %v478, 7
  %v480 = vsub.s32 0, %v479
  %v481 = vrot.slane %v476, %v480
  %v483 = vadd.f32 %v475, %v481
  %v484 = vmax.f32 %v483, 0.0
  %v485 = vld [vmem:[%s8] sm:$0xff]
  %v486 = vld [vmem:[%s9] sm:$0x1]
  %v488 = vlaneseq
  %v489 = vshrl.u32 %v488, 7
  %v490 = vsub.s32 0, %v489
  %v491 = vrot.slane %v486, %v490
  %v494 = vsel %vm38, %v484, 0
  %496 = vmatprep.subr.mxu0 0.0
  %497 = vmatpush1.msra.mxu0 0.0
  %498 = vmatprep.subr.mxu0 0.0
  %499 = vmatpush1.msra.mxu0 0.0
  %500 = vmatprep.subr.mxu0 0.0
  %501 = vmatpush1.msra.mxu0 0.0
  %502 = vmatprep.subr.mxu0 0.0
  %503 = vmatpush1.msra.mxu0 0.0
  %504 = vmatprep.subr.mxu0 0.0
  %505 = vmatpush1.msra.mxu0 0.0
  %506 = vmatprep.subr.mxu0 0.0
  %507 = vmatpush1.msra.mxu0 0.0
  %508 = vmatprep.subr.mxu0 0.0
  %509 = vmatpush1.msra.mxu0 0.0
  %510 = vmatprep.subr.mxu0 0.0
  %511 = vmatpush1.msra.mxu0 0.0
  %512 = vmatprep.subr.mxu0 0.0
  %513 = vmatpush1.msra.mxu0 0.0
  %514 = vmatprep.subr.mxu0 0.0
  %515 = vmatpush1.msra.mxu0 0.0
  %516 = vmatprep.subr.mxu0 0.0
  %517 = vmatpush1.msra.mxu0 0.0
  %518 = vmatprep.subr.mxu0 0.0
  %519 = vmatpush1.msra.mxu0 0.0
  %520 = vmatprep.subr.mxu0 0.0
  %521 = vmatpush1.msra.mxu0 0.0
  %522 = vmatprep.subr.mxu0 0.0
  %523 = vmatpush1.msra.mxu0 0.0
  %524 = vmatprep.subr.mxu0 0.0
  %525 = vmatpush1.msra.mxu0 0.0
  %526 = vmatprep.subr.mxu0 0.0
  %527 = vmatpush1.msra.mxu0 %v485
  %528 = vmatprep.subr.mxu0 0.0
  %529 = vmatpush2.msra.mxu0 0.0
  %530 = vmatprep.subr.mxu0 0.0
  %531 = vmatpush2.msra.mxu0 0.0
  %532 = vmatprep.subr.mxu0 0.0
  %533 = vmatpush2.msra.mxu0 0.0
  %534 = vmatprep.subr.mxu0 0.0
  %535 = vmatpush2.msra.mxu0 0.0
  %536 = vmatprep.subr.mxu0 0.0
  %537 = vmatpush2.msra.mxu0 0.0
  %538 = vmatprep.subr.mxu0 0.0
  %539 = vmatpush2.msra.mxu0 0.0
  %540 = vmatprep.subr.mxu0 0.0
  %541 = vmatpush2.msra.mxu0 0.0
  %542 = vmatprep.subr.mxu0 0.0
  %543 = vmatpush2.msra.mxu0 0.0
  %544 = vmatprep.subr.mxu0 0.0
  %545 = vmatpush2.msra.mxu0 0.0
  %546 = vmatprep.subr.mxu0 0.0
  %547 = vmatpush2.msra.mxu0 0.0
  %548 = vmatprep.subr.mxu0 0.0
  %549 = vmatpush2.msra.mxu0 0.0
  %550 = vmatprep.subr.mxu0 0.0
  %551 = vmatpush2.msra.mxu0 0.0
  %552 = vmatprep.subr.mxu0 0.0
  %553 = vmatpush2.msra.mxu0 0.0
  %554 = vmatprep.subr.mxu0 0.0
  %555 = vmatpush2.msra.mxu0 0.0
  %556 = vmatprep.subr.mxu0 0.0
  %557 = vmatpush2.msra.mxu0 0.0
  %558 = vmatprep.subr.mxu0 0.0
  %559 = vmatpush2.msra.mxu0 0.0
  %560 = vmatprep.mubr.f32.mxu0 0.0
  %561 = vmatmul.mubr.f32.gmra.mxu0 %v494
  %v562 = vpop.f32.mrf.mxu0
  %v563 = vadd.f32 %v491, %v562
  %v564 = vpop.f32.mrf.mxu0
  %565 = vdwg.mxu0
  %vm566 = vcmask 31744
  %567 = vst.msk [vmem:[%s10] sm:$0xff] %vm566, %v563
  // Predicated region
  $region42: #{mygwnn_forward.1} parent=0 // pred_check
    _
  $region43: #{mygwnn_forward.1} parent=0 // pred_check_branch
    %569 = sbr.rel (0) target = $region45
  $region44: #{mygwnn_forward.1} parent=0 // pred_region
    _
  $region45: #{mygwnn_forward.1} parent=0 // pred_fallthru
    _
  // Predicated region
  $region46: #{mygwnn_forward.1} parent=0 // pred_check
    _
  $region47: #{mygwnn_forward.1} parent=0 // pred_check_branch
    %571 = sbr.rel (0) target = $region49
  $region48: #{mygwnn_forward.1} parent=0 // pred_region
    _
  $region49: #{mygwnn_forward.1} parent=0 // pred_fallthru
    _

</llo_original>
